<compile_context>
chip_gen: v5e
topology: v5e:2x2
jax: 0.10.0
libtpu: 0.0.40
codegen_flags: <defaults>
</compile_context>

<pallas_src>
import jax
import jax.numpy as jnp
from jax.experimental import pallas as pl
from jax.experimental.pallas import tpu as pltpu


def _pool_matmul_kernel(x_ref, p_ref, o_ref):
    """One MXU matmul per row-tile.

    x_ref: (tile_m, g*H*W)     -- g images' pixels per row (contiguous strip).
    p_ref: (g*H*W, g*out_HW)   -- constant block-diagonal pooling matrix whose
                                  nonzero entries are 1/K (VMEM-resident).
    o_ref: (tile_m, g*out_HW)
    """
    o_ref[...] = jnp.dot(
        x_ref[...], p_ref[...], preferred_element_type=jnp.float32
    ).astype(o_ref.dtype)


def _sublane_multiple(dtype):
    itemsize = jnp.dtype(dtype).itemsize
    if itemsize >= 4:
        return 8
    if itemsize == 2:
        return 16
    return 32


def adaptive_avg_pool2d(
    x,
    output_size,
    *,
    target_tile_bytes=8 * 1024 * 1024,        # per input block (double-buffered)
    max_pool_matrix_bytes=4 * 1024 * 1024,    # budget for the resident matrix
):
    """Pallas implementation of MyAdaptiveAvgPool2dEfficient.forward.

    Args:
      x: (N, C, H, W) array (NCHW, like PyTorch).
      output_size: int or (out_H, out_W).
    Returns:
      (N, C, out_H, out_W) array, same dtype as x.
    """
    if isinstance(output_size, int):
        out_H, out_W = output_size, output_size
    else:
        out_H, out_W = output_size

    N, C, H, W = x.shape
    if H % out_H != 0 or W % out_W != 0:
        raise ValueError(
            "For this efficient implementation, H and W must be divisible "
            "by out_H and out_W."
        )
    kh = H // out_H
    kw = W // out_W
    K = kh * kw
    M = N * C
    in_cols = H * W
    out_cols = out_H * out_W
    itemsize = jnp.dtype(x.dtype).itemsize

    # ---- group g images per block row so the output lane axis is ~128 wide ----
    g = 1
    if out_cols < 128:
        g_target = max(1, 128 // out_cols)
        for cand in range(min(g_target, M), 0, -1):
            if M % cand != 0:
                continue
            if (cand * in_cols) * (cand * out_cols) * itemsize > max_pool_matrix_bytes:
                continue
            if M >= 2 and M // cand < 2:
                continue          # keep >= 2 block rows so the grid can still split
            g = cand
            break
    Mg = M // g
    in_cols_g = g * in_cols
    out_cols_g = g * out_cols

    # Free, contiguous reshape (no transpose, no materialized unfold).
    x2 = x.reshape(Mg, in_cols_g)

    # ---- constant pooling matrix (1/K baked in), block-diagonal over g ----
    hw = jnp.arange(in_cols, dtype=jnp.int32)
    col = (hw // W // kh) * out_W + (hw % W) // kw
    base = col[:, None] == jnp.arange(out_cols, dtype=jnp.int32)[None, :]
    base = base.astype(jnp.float32) * (1.0 / K)
    pool_mat = jnp.kron(jnp.eye(g, dtype=jnp.float32), base) if g > 1 else base
    pool_mat = pool_mat.astype(x.dtype)        # feed the MXU in the native dtype

    # ---- row-tile sizing ----
    sub = _sublane_multiple(x.dtype)
    bytes_per_row = max(in_cols_g * itemsize, 1)
    tile_m = max(1, target_tile_bytes // bytes_per_row)
    tile_m = max(sub, (tile_m // sub) * sub)
    if tile_m >= Mg:
        tile_m = Mg                             # full-extent block is always legal
    if Mg >= 2 * sub:
        # Keep at least two row-tiles so the "parallel" axis can shard across
        # v7x's two TensorCores (tile stays a sublane multiple).
        cap = max(sub, ((Mg // 2) // sub) * sub)
        tile_m = min(tile_m, cap)
    grid = (pl.cdiv(Mg, tile_m),)

    # ---- explicit VMEM budget: 2x input + 2x output + 2x pooling matrix ----
    vmem_bytes = (
        2 * tile_m * in_cols_g * itemsize
        + 2 * tile_m * out_cols_g * itemsize
        + 2 * in_cols_g * out_cols_g * itemsize
        + (4 << 20)
    )
    vmem_bytes = int(min(max(vmem_bytes, 16 << 20), 48 << 20))

    out_flat = pl.pallas_call(
        _pool_matmul_kernel,
        out_shape=jax.ShapeDtypeStruct((Mg, out_cols_g), x.dtype),
        grid=grid,
        in_specs=[
            pl.BlockSpec((tile_m, in_cols_g), lambda i: (i, 0)),
            pl.BlockSpec((in_cols_g, out_cols_g), lambda i: (0, 0)),  # resident
        ],
        out_specs=pl.BlockSpec((tile_m, out_cols_g), lambda i: (i, 0)),
        compiler_params=pltpu.CompilerParams(
            dimension_semantics=("parallel",),   # independent row tiles
            vmem_limit_bytes=vmem_bytes,
        ),
    )(x2, pool_mat)

    # Free reshape back to the NCHW output layout.
    return out_flat.reshape(N, C, out_H, out_W)


if __name__ == "__main__":
    key = jax.random.PRNGKey(0)
    N, C, H, W = 2, 4, 16, 16
    output_size = 4     # -> (4, 4) output, 4x4 windows, stride 4

    x = jax.random.normal(key, (N, C, H, W), dtype=jnp.float32)

    out = adaptive_avg_pool2d(x, output_size)
    out = jax.block_until_ready(out)

    # Reference (plain JAX, same semantics as the PyTorch module).
    out_H = out_W = output_size
    kh, kw = H // out_H, W // out_W
    ref = x.reshape(N, C, out_H, kh, out_W, kw).mean(axis=(3, 5))

    assert out.shape == (N, C, out_H, out_W)
    assert out.dtype == x.dtype
    assert jnp.allclose(out, ref, atol=2e-5, rtol=2e-5)

    print("KERNEL_OK")
</pallas_src>

<mosaic_0001>
module attributes {stable_mosaic.version = 11 : i64} {
  func.func @_pool_matmul_kernel(%arg0: i32, %arg1: memref<2x1024xf32, #tpu.memory_space<vmem>>, %arg2: memref<1024x64xf32, #tpu.memory_space<vmem>>, %arg3: memref<2x64xf32, #tpu.memory_space<vmem>>) attributes {dimension_semantics = [#tpu.dimension_semantics<parallel>], iteration_bounds = array<i64: 1>, scalar_prefetch = 0 : i64, scratch_operands = 0 : i64, tpu.core_type = #tpu.core_type<tc>, window_params = [{transform_indices = @transform_0, window_bounds = array<i64: 2, 1024>}, {pipeline_mode = #tpu.pipeline_mode<synchronous>, transform_indices = @transform_1, window_bounds = array<i64: 1024, 64>}, {transform_indices = @transform_2, window_bounds = array<i64: 2, 64>}]} {
    %c0 = arith.constant 0 : index
    %c0_0 = arith.constant 0 : index
    %0 = vector.load %arg1[%c0, %c0_0] : memref<2x1024xf32, #tpu.memory_space<vmem>>, vector<2x1024xf32>
    %c0_1 = arith.constant 0 : index
    %c0_2 = arith.constant 0 : index
    %1 = vector.load %arg2[%c0_1, %c0_2] : memref<1024x64xf32, #tpu.memory_space<vmem>>, vector<1024x64xf32>
    %cst = arith.constant dense<0.000000e+00> : vector<2x64xf32>
    %2 = tpu.matmul %0, %1, %cst {dimension_numbers = #tpu.dot_dimension_numbers<[1], [0], [0], [1], [0, 0, 1, 1], [], []>} : vector<2x1024xf32>, vector<1024x64xf32>, vector<2x64xf32> -> vector<2x64xf32>
    %c0_3 = arith.constant 0 : index
    %c0_4 = arith.constant 0 : index
    %3 = vector.load %arg3[%c0_3, %c0_4] : memref<2x64xf32, #tpu.memory_space<vmem>>, vector<2x64xf32>
    tpu.vector_store %arg3[%c0_3, %c0_4], %2 {strides = array<i32>} : memref<2x64xf32, #tpu.memory_space<vmem>>, vector<2x64xf32>,
    return
  }
  func.func @transform_0(%arg0: i32) -> (i32, i32) {
    %c0_i32 = arith.constant 0 : i32
    %c0_i32_0 = arith.constant 0 : i32
    return %arg0, %c0_i32 : i32, i32
  }
  func.func @transform_1(%arg0: i32) -> (i32, i32) {
    %c0_i32 = arith.constant 0 : i32
    %c0_i32_0 = arith.constant 0 : i32
    %c0_i32_1 = arith.constant 0 : i32
    return %c0_i32, %c0_i32_0 : i32, i32
  }
  func.func @transform_2(%arg0: i32) -> (i32, i32) {
    %c0_i32 = arith.constant 0 : i32
    %c0_i32_0 = arith.constant 0 : i32
    return %arg0, %c0_i32 : i32, i32
  }
}

</mosaic_0001>

<llo_original>
// kernel: tpu_custom_call.1
$region0: #{tpu_custom_call.1}
  #allocation0 [shape = 'u32[]', space=smem, size = 0x4, offset = 0x4, fixed_abs, tag = 'smem constant byte address 0x4 - core index']
  #allocation1 [shape = 'u32[72,128]{1,0:T(1,128)}', space=vmem, size = 0x9000, scoped, tag = 'internal scratch']
  %s0 = inlined_call_operand.vmem [shape: f32[2,1024], index: 0, kind: input, shape index: {}]
  %s1 = inlined_call_operand.vmem [shape: f32[1024,64], index: 1, kind: input, shape index: {}]
  %s2 = inlined_call_operand.hbm [shape: f32[2,64], index: 2, kind: output, shape index: {}]
  %s3 = sld [smem:[#allocation0]]
  $region18: #{tpu_custom_call.1} parent=0
    _
  %s5 = ssub.s32 1, %s3
  %s6 = scalar_select 0, %s5, %s3
  $region1: #{tpu_custom_call.1} parent=0
    #allocation2 [shape = 'u8[1024]{0}', space=vmem, size = 0x400, scoped, tag = 'output window, operand 0, single buffered']
    #allocation3 [shape = 's32[1]{0}', space=sflag, size = 0x4, scoped, tag = 'scoped memory for tpu_custom_call.1']
    %7 = vsyncpa [#allocation3], 0
    // Predicated region
    $region2: #{tpu_custom_call.1} parent=1 // pred_check
      _
    $region3: #{tpu_custom_call.1} parent=1 // pred_check_branch
      %9 = sbr.rel (0) target = $region5
    $region4: #{tpu_custom_call.1} parent=1 // pred_region
      _
    $region5: #{tpu_custom_call.1} parent=1 // pred_fallthru
      _
    // Predicated region
    $region6: #{tpu_custom_call.1} parent=1 // pred_check
      _
    $region7: #{tpu_custom_call.1} parent=1 // pred_check_branch
      %11 = sbr.rel (0) target = $region9
    $region8: #{tpu_custom_call.1} parent=1 // pred_region
      _
    $region9: #{tpu_custom_call.1} parent=1 // pred_fallthru
      _
    %v12 = vld [vmem:[%s0] sm:$0xff]
    %v13 = vld [vmem:[%s0 + $0x8] sm:$0xff]
    %v14 = vld [vmem:[%s1] sm:$0xff]
    %v15 = vld [vmem:[%s1 + $0x8] sm:$0xff]
    %v16 = vld [vmem:[%s1 + $0x10] sm:$0xff]
    %v17 = vld [vmem:[%s1 + $0x18] sm:$0xff]
    %v18 = vld [vmem:[%s1 + $0x20] sm:$0xff]
    %v19 = vld [vmem:[%s1 + $0x28] sm:$0xff]
    %v20 = vld [vmem:[%s1 + $0x30] sm:$0xff]
    %v21 = vld [vmem:[%s1 + $0x38] sm:$0xff]
    %v22 = vld [vmem:[%s1 + $0x40] sm:$0xff]
    %v23 = vld [vmem:[%s1 + $0x48] sm:$0xff]
    %v24 = vld [vmem:[%s1 + $0x50] sm:$0xff]
    %v25 = vld [vmem:[%s1 + $0x58] sm:$0xff]
    %v26 = vld [vmem:[%s1 + $0x60] sm:$0xff]
    %v27 = vld [vmem:[%s1 + $0x68] sm:$0xff]
    %v28 = vld [vmem:[%s1 + $0x70] sm:$0xff]
    %v29 = vld [vmem:[%s1 + $0x78] sm:$0xff]
    %v30 = vld [vmem:[%s1 + $0x80] sm:$0xff]
    %v31 = vld [vmem:[%s1 + $0x88] sm:$0xff]
    %v32 = vld [vmem:[%s1 + $0x90] sm:$0xff]
    %v33 = vld [vmem:[%s1 + $0x98] sm:$0xff]
    %v34 = vld [vmem:[%s1 + $0xa0] sm:$0xff]
    %v35 = vld [vmem:[%s1 + $0xa8] sm:$0xff]
    %v36 = vld [vmem:[%s1 + $0xb0] sm:$0xff]
    %v37 = vld [vmem:[%s1 + $0xb8] sm:$0xff]
    %v38 = vld [vmem:[%s1 + $0xc0] sm:$0xff]
    %v39 = vld [vmem:[%s1 + $0xc8] sm:$0xff]
    %v40 = vld [vmem:[%s1 + $0xd0] sm:$0xff]
    %v41 = vld [vmem:[%s1 + $0xd8] sm:$0xff]
    %v42 = vld [vmem:[%s1 + $0xe0] sm:$0xff]
    %v43 = vld [vmem:[%s1 + $0xe8] sm:$0xff]
    %v44 = vld [vmem:[%s1 + $0xf0] sm:$0xff]
    %v45 = vld [vmem:[%s1 + $0xf8] sm:$0xff]
    %v46 = vld [vmem:[%s1 + $0x100] sm:$0xff]
    %v47 = vld [vmem:[%s1 + $0x108] sm:$0xff]
    %v48 = vld [vmem:[%s1 + $0x110] sm:$0xff]
    %v49 = vld [vmem:[%s1 + $0x118] sm:$0xff]
    %v50 = vld [vmem:[%s1 + $0x120] sm:$0xff]
    %v51 = vld [vmem:[%s1 + $0x128] sm:$0xff]
    %v52 = vld [vmem:[%s1 + $0x130] sm:$0xff]
    %v53 = vld [vmem:[%s1 + $0x138] sm:$0xff]
    %v54 = vld [vmem:[%s1 + $0x140] sm:$0xff]
    %v55 = vld [vmem:[%s1 + $0x148] sm:$0xff]
    %v56 = vld [vmem:[%s1 + $0x150] sm:$0xff]
    %v57 = vld [vmem:[%s1 + $0x158] sm:$0xff]
    %v58 = vld [vmem:[%s1 + $0x160] sm:$0xff]
    %v59 = vld [vmem:[%s1 + $0x168] sm:$0xff]
    %v60 = vld [vmem:[%s1 + $0x170] sm:$0xff]
    %v61 = vld [vmem:[%s1 + $0x178] sm:$0xff]
    %v62 = vld [vmem:[%s1 + $0x180] sm:$0xff]
    %v63 = vld [vmem:[%s1 + $0x188] sm:$0xff]
    %v64 = vld [vmem:[%s1 + $0x190] sm:$0xff]
    %v65 = vld [vmem:[%s1 + $0x198] sm:$0xff]
    %v66 = vld [vmem:[%s1 + $0x1a0] sm:$0xff]
    %v67 = vld [vmem:[%s1 + $0x1a8] sm:$0xff]
    %v68 = vld [vmem:[%s1 + $0x1b0] sm:$0xff]
    %v69 = vld [vmem:[%s1 + $0x1b8] sm:$0xff]
    %v70 = vld [vmem:[%s1 + $0x1c0] sm:$0xff]
    %v71 = vld [vmem:[%s1 + $0x1c8] sm:$0xff]
    %v72 = vld [vmem:[%s1 + $0x1d0] sm:$0xff]
    %v73 = vld [vmem:[%s1 + $0x1d8] sm:$0xff]
    %v74 = vld [vmem:[%s1 + $0x1e0] sm:$0xff]
    %v75 = vld [vmem:[%s1 + $0x1e8] sm:$0xff]
    %v76 = vld [vmem:[%s1 + $0x1f0] sm:$0xff]
    %v77 = vld [vmem:[%s1 + $0x1f8] sm:$0xff]
    %v78 = vld [vmem:[%s1 + $0x200] sm:$0xff]
    %v79 = vld [vmem:[%s1 + $0x208] sm:$0xff]
    %v80 = vld [vmem:[%s1 + $0x210] sm:$0xff]
    %v81 = vld [vmem:[%s1 + $0x218] sm:$0xff]
    %v82 = vld [vmem:[%s1 + $0x220] sm:$0xff]
    %v83 = vld [vmem:[%s1 + $0x228] sm:$0xff]
    %v84 = vld [vmem:[%s1 + $0x230] sm:$0xff]
    %v85 = vld [vmem:[%s1 + $0x238] sm:$0xff]
    %v86 = vld [vmem:[%s1 + $0x240] sm:$0xff]
    %v87 = vld [vmem:[%s1 + $0x248] sm:$0xff]
    %v88 = vld [vmem:[%s1 + $0x250] sm:$0xff]
    %v89 = vld [vmem:[%s1 + $0x258] sm:$0xff]
    %v90 = vld [vmem:[%s1 + $0x260] sm:$0xff]
    %v91 = vld [vmem:[%s1 + $0x268] sm:$0xff]
    %v92 = vld [vmem:[%s1 + $0x270] sm:$0xff]
    %v93 = vld [vmem:[%s1 + $0x278] sm:$0xff]
    %v94 = vld [vmem:[%s1 + $0x280] sm:$0xff]
    %v95 = vld [vmem:[%s1 + $0x288] sm:$0xff]
    %v96 = vld [vmem:[%s1 + $0x290] sm:$0xff]
    %v97 = vld [vmem:[%s1 + $0x298] sm:$0xff]
    %v98 = vld [vmem:[%s1 + $0x2a0] sm:$0xff]
    %v99 = vld [vmem:[%s1 + $0x2a8] sm:$0xff]
    %v100 = vld [vmem:[%s1 + $0x2b0] sm:$0xff]
    %v101 = vld [vmem:[%s1 + $0x2b8] sm:$0xff]
    %v102 = vld [vmem:[%s1 + $0x2c0] sm:$0xff]
    %v103 = vld [vmem:[%s1 + $0x2c8] sm:$0xff]
    %v104 = vld [vmem:[%s1 + $0x2d0] sm:$0xff]
    %v105 = vld [vmem:[%s1 + $0x2d8] sm:$0xff]
    %v106 = vld [vmem:[%s1 + $0x2e0] sm:$0xff]
    %v107 = vld [vmem:[%s1 + $0x2e8] sm:$0xff]
    %v108 = vld [vmem:[%s1 + $0x2f0] sm:$0xff]
    %v109 = vld [vmem:[%s1 + $0x2f8] sm:$0xff]
    %v110 = vld [vmem:[%s1 + $0x300] sm:$0xff]
    %v111 = vld [vmem:[%s1 + $0x308] sm:$0xff]
    %v112 = vld [vmem:[%s1 + $0x310] sm:$0xff]
    %v113 = vld [vmem:[%s1 + $0x318] sm:$0xff]
    %v114 = vld [vmem:[%s1 + $0x320] sm:$0xff]
    %v115 = vld [vmem:[%s1 + $0x328] sm:$0xff]
    %v116 = vld [vmem:[%s1 + $0x330] sm:$0xff]
    %v117 = vld [vmem:[%s1 + $0x338] sm:$0xff]
    %v118 = vld [vmem:[%s1 + $0x340] sm:$0xff]
    %v119 = vld [vmem:[%s1 + $0x348] sm:$0xff]
    %v120 = vld [vmem:[%s1 + $0x350] sm:$0xff]
    %v121 = vld [vmem:[%s1 + $0x358] sm:$0xff]
    %v122 = vld [vmem:[%s1 + $0x360] sm:$0xff]
    %v123 = vld [vmem:[%s1 + $0x368] sm:$0xff]
    %v124 = vld [vmem:[%s1 + $0x370] sm:$0xff]
    %v125 = vld [vmem:[%s1 + $0x378] sm:$0xff]
    %v126 = vld [vmem:[%s1 + $0x380] sm:$0xff]
    %v127 = vld [vmem:[%s1 + $0x388] sm:$0xff]
    %v128 = vld [vmem:[%s1 + $0x390] sm:$0xff]
    %v129 = vld [vmem:[%s1 + $0x398] sm:$0xff]
    %v130 = vld [vmem:[%s1 + $0x3a0] sm:$0xff]
    %v131 = vld [vmem:[%s1 + $0x3a8] sm:$0xff]
    %v132 = vld [vmem:[%s1 + $0x3b0] sm:$0xff]
    %v133 = vld [vmem:[%s1 + $0x3b8] sm:$0xff]
    %v134 = vld [vmem:[%s1 + $0x3c0] sm:$0xff]
    %v135 = vld [vmem:[%s1 + $0x3c8] sm:$0xff]
    %v136 = vld [vmem:[%s1 + $0x3d0] sm:$0xff]
    %v137 = vld [vmem:[%s1 + $0x3d8] sm:$0xff]
    %v138 = vld [vmem:[%s1 + $0x3e0] sm:$0xff]
    %v139 = vld [vmem:[%s1 + $0x3e8] sm:$0xff]
    %v140 = vld [vmem:[%s1 + $0x3f0] sm:$0xff]
    %v141 = vld [vmem:[%s1 + $0x3f8] sm:$0xff]
    %144 = vst [vmem:[#allocation1] ss:$4 sm:$0xff] %v12
    %s145 = scalar_lea.vmem [#allocation1], 32
    %146 = vst [vmem:[%s145] ss:$4 sm:$0xff] %v13
    %v147 = vld.sshfl [vmem:[#allocation1] sm:$0xff pattern:$0x73625140]
    %v148 = vld.sshfl [vmem:[#allocation1 + $0x8] sm:$0xff pattern:$0x73625140]
    %v149 = vld.sshfl [vmem:[#allocation1 + $0x10] sm:$0xff pattern:$0x73625140]
    %v150 = vld.sshfl [vmem:[#allocation1 + $0x18] sm:$0xff pattern:$0x73625140]
    %v151 = vld.sshfl [vmem:[#allocation1 + $0x20] sm:$0xff pattern:$0x73625140]
    %v152 = vld.sshfl [vmem:[#allocation1 + $0x28] sm:$0xff pattern:$0x73625140]
    %v153 = vld.sshfl [vmem:[#allocation1 + $0x30] sm:$0xff pattern:$0x73625140]
    %v154 = vld.sshfl [vmem:[#allocation1 + $0x38] sm:$0xff pattern:$0x73625140]
    %163 = vmatpush.msra.mxu0 %v29
    %164 = vmatpush.msra.mxu0 %v28
    %165 = vmatpush.msra.mxu0 %v27
    %166 = vmatpush.msra.mxu0 %v26
    %167 = vmatpush.msra.mxu0 %v25
    %168 = vmatpush.msra.mxu0 %v24
    %169 = vmatpush.msra.mxu0 %v23
    %170 = vmatpush.msra.mxu0 %v22
    %171 = vmatpush.msra.mxu0 %v21
    %172 = vmatpush.msra.mxu0 %v20
    %173 = vmatpush.msra.mxu0 %v19
    %174 = vmatpush.msra.mxu0 %v18
    %175 = vmatpush.msra.mxu0 %v17
    %176 = vmatpush.msra.mxu0 %v16
    %177 = vmatpush.msra.mxu0 %v15
    %178 = vmatpush.msra.mxu0 %v14
    %179 = vmatmul.f32.gmra.mxu0 %v147
    %v180 = vpop.f32.mrf.mxu0
    %v181 = vadd.f32 0.0, %v180
    %182 = vdwg.mxu0
    %183 = vmatpush.msra.mxu0 %v45
    %184 = vmatpush.msra.mxu0 %v44
    %185 = vmatpush.msra.mxu0 %v43
    %186 = vmatpush.msra.mxu0 %v42
    %187 = vmatpush.msra.mxu0 %v41
    %188 = vmatpush.msra.mxu0 %v40
    %189 = vmatpush.msra.mxu0 %v39
    %190 = vmatpush.msra.mxu0 %v38
    %191 = vmatpush.msra.mxu0 %v37
    %192 = vmatpush.msra.mxu0 %v36
    %193 = vmatpush.msra.mxu0 %v35
    %194 = vmatpush.msra.mxu0 %v34
    %195 = vmatpush.msra.mxu0 %v33
    %196 = vmatpush.msra.mxu0 %v32
    %197 = vmatpush.msra.mxu0 %v31
    %198 = vmatpush.msra.mxu0 %v30
    %199 = vmatmul.f32.gmra.mxu0 %v148
    %v200 = vpop.f32.mrf.mxu0
    %v201 = vadd.f32 %v181, %v200
    %202 = vdwg.mxu0
    %203 = vmatpush.msra.mxu0 %v61
    %204 = vmatpush.msra.mxu0 %v60
    %205 = vmatpush.msra.mxu0 %v59
    %206 = vmatpush.msra.mxu0 %v58
    %207 = vmatpush.msra.mxu0 %v57
    %208 = vmatpush.msra.mxu0 %v56
    %209 = vmatpush.msra.mxu0 %v55
    %210 = vmatpush.msra.mxu0 %v54
    %211 = vmatpush.msra.mxu0 %v53
    %212 = vmatpush.msra.mxu0 %v52
    %213 = vmatpush.msra.mxu0 %v51
    %214 = vmatpush.msra.mxu0 %v50
    %215 = vmatpush.msra.mxu0 %v49
    %216 = vmatpush.msra.mxu0 %v48
    %217 = vmatpush.msra.mxu0 %v47
    %218 = vmatpush.msra.mxu0 %v46
    %219 = vmatmul.f32.gmra.mxu0 %v149
    %v220 = vpop.f32.mrf.mxu0
    %v221 = vadd.f32 %v201, %v220
    %222 = vdwg.mxu0
    %223 = vmatpush.msra.mxu0 %v77
    %224 = vmatpush.msra.mxu0 %v76
    %225 = vmatpush.msra.mxu0 %v75
    %226 = vmatpush.msra.mxu0 %v74
    %227 = vmatpush.msra.mxu0 %v73
    %228 = vmatpush.msra.mxu0 %v72
    %229 = vmatpush.msra.mxu0 %v71
    %230 = vmatpush.msra.mxu0 %v70
    %231 = vmatpush.msra.mxu0 %v69
    %232 = vmatpush.msra.mxu0 %v68
    %233 = vmatpush.msra.mxu0 %v67
    %234 = vmatpush.msra.mxu0 %v66
    %235 = vmatpush.msra.mxu0 %v65
    %236 = vmatpush.msra.mxu0 %v64
    %237 = vmatpush.msra.mxu0 %v63
    %238 = vmatpush.msra.mxu0 %v62
    %239 = vmatmul.f32.gmra.mxu0 %v150
    %v240 = vpop.f32.mrf.mxu0
    %v241 = vadd.f32 %v221, %v240
    %242 = vdwg.mxu0
    %243 = vmatpush.msra.mxu0 %v93
    %244 = vmatpush.msra.mxu0 %v92
    %245 = vmatpush.msra.mxu0 %v91
    %246 = vmatpush.msra.mxu0 %v90
    %247 = vmatpush.msra.mxu0 %v89
    %248 = vmatpush.msra.mxu0 %v88
    %249 = vmatpush.msra.mxu0 %v87
    %250 = vmatpush.msra.mxu0 %v86
    %251 = vmatpush.msra.mxu0 %v85
    %252 = vmatpush.msra.mxu0 %v84
    %253 = vmatpush.msra.mxu0 %v83
    %254 = vmatpush.msra.mxu0 %v82
    %255 = vmatpush.msra.mxu0 %v81
    %256 = vmatpush.msra.mxu0 %v80
    %257 = vmatpush.msra.mxu0 %v79
    %258 = vmatpush.msra.mxu0 %v78
    %259 = vmatmul.f32.gmra.mxu0 %v151
    %v260 = vpop.f32.mrf.mxu0
    %v261 = vadd.f32 %v241, %v260
    %262 = vdwg.mxu0
    %263 = vmatpush.msra.mxu0 %v109
    %264 = vmatpush.msra.mxu0 %v108
    %265 = vmatpush.msra.mxu0 %v107
    %266 = vmatpush.msra.mxu0 %v106
    %267 = vmatpush.msra.mxu0 %v105
    %268 = vmatpush.msra.mxu0 %v104
    %269 = vmatpush.msra.mxu0 %v103
    %270 = vmatpush.msra.mxu0 %v102
    %271 = vmatpush.msra.mxu0 %v101
    %272 = vmatpush.msra.mxu0 %v100
    %273 = vmatpush.msra.mxu0 %v99
    %274 = vmatpush.msra.mxu0 %v98
    %275 = vmatpush.msra.mxu0 %v97
    %276 = vmatpush.msra.mxu0 %v96
    %277 = vmatpush.msra.mxu0 %v95
    %278 = vmatpush.msra.mxu0 %v94
    %279 = vmatmul.f32.gmra.mxu0 %v152
    %v280 = vpop.f32.mrf.mxu0
    %v281 = vadd.f32 %v261, %v280
    %282 = vdwg.mxu0
    %283 = vmatpush.msra.mxu0 %v125
    %284 = vmatpush.msra.mxu0 %v124
    %285 = vmatpush.msra.mxu0 %v123
    %286 = vmatpush.msra.mxu0 %v122
    %287 = vmatpush.msra.mxu0 %v121
    %288 = vmatpush.msra.mxu0 %v120
    %289 = vmatpush.msra.mxu0 %v119
    %290 = vmatpush.msra.mxu0 %v118
    %291 = vmatpush.msra.mxu0 %v117
    %292 = vmatpush.msra.mxu0 %v116
    %293 = vmatpush.msra.mxu0 %v115
    %294 = vmatpush.msra.mxu0 %v114
    %295 = vmatpush.msra.mxu0 %v113
    %296 = vmatpush.msra.mxu0 %v112
    %297 = vmatpush.msra.mxu0 %v111
    %298 = vmatpush.msra.mxu0 %v110
    %299 = vmatmul.f32.gmra.mxu0 %v153
    %v300 = vpop.f32.mrf.mxu0
    %v301 = vadd.f32 %v281, %v300
    %302 = vdwg.mxu0
    %303 = vmatpush.msra.mxu0 %v141
    %304 = vmatpush.msra.mxu0 %v140
    %305 = vmatpush.msra.mxu0 %v139
    %306 = vmatpush.msra.mxu0 %v138
    %307 = vmatpush.msra.mxu0 %v137
    %308 = vmatpush.msra.mxu0 %v136
    %309 = vmatpush.msra.mxu0 %v135
    %310 = vmatpush.msra.mxu0 %v134
    %311 = vmatpush.msra.mxu0 %v133
    %312 = vmatpush.msra.mxu0 %v132
    %313 = vmatpush.msra.mxu0 %v131
    %314 = vmatpush.msra.mxu0 %v130
    %315 = vmatpush.msra.mxu0 %v129
    %316 = vmatpush.msra.mxu0 %v128
    %317 = vmatpush.msra.mxu0 %v127
    %318 = vmatpush.msra.mxu0 %v126
    %319 = vmatmul.f32.gmra.mxu0 %v154
    %v320 = vpop.f32.mrf.mxu0
    %v321 = vadd.f32 %v301, %v320
    %322 = vdwg.mxu0
    %vm323 = vcmask 517120
    %324 = vst.msk [vmem:[#allocation2] sm:$0x3] %vm323, %v321
    // Predicated region
    $region10: #{tpu_custom_call.1} parent=1 // pred_check
      _
    $region11: #{tpu_custom_call.1} parent=1 // pred_check_branch
      %326 = sbr.rel (0) target = $region13
    $region12: #{tpu_custom_call.1} parent=1 // pred_region
      %328 = vsyncadd [#allocation3], 0
      %s330 = sshll.u32 [#allocation2], 4
      %s331 = int_to_ptr.vmem [resolvable:$true] %s330
      %s332 = sshll.u32 %s2, 4
      %s333 = int_to_ptr.hbm [resolvable:$true] %s332
      %335 = dma.vmem_to_hbm [thread:$0]  %s331, 32, %s333, [#allocation3]
    $region13: #{tpu_custom_call.1} parent=1 // pred_fallthru
      _
    // Predicated region
    $region14: #{tpu_custom_call.1} parent=1 // pred_check
      _
    $region15: #{tpu_custom_call.1} parent=1 // pred_check_branch
      %337 = sbr.rel (0) target = $region17
    $region16: #{tpu_custom_call.1} parent=1 // pred_region
      %339 = dma.done [#allocation3], 32
    $region17: #{tpu_custom_call.1} parent=1 // pred_fallthru
      _
    %340 = vsyncpa [#allocation3], 1

</llo_original>
